<compile_context>
chip_gen: v7x
topology: tpu7x:2x2x1
jax: 0.10.0
libtpu: 0.0.40
codegen_flags: <defaults>
</compile_context>

<pallas_src>
import jax
import jax.numpy as jnp
from jax.experimental import pallas as pl
from jax.experimental.pallas import tpu as pltpu


def _round_up(n, m):
    return ((n + m - 1) // m) * m


def _softplus(z):
    # Matches torch.nn.Softplus(beta=1, threshold=20): z > 20 -> z else log1p(exp(z)).
    # (exp overflow on the untaken branch is selected away by the where.)
    return jnp.where(z > 20.0, z, jnp.log1p(jnp.exp(z)))


def _deep_indep_beta_kernel(x_ref, w1_ref, b1_ref, wh_ref, bh_ref, out_ref):
    # backbone: Linear + ReLU  (MXU matmul in bf16, f32 accumulation)
    h = jnp.dot(x_ref[...], w1_ref[...], preferred_element_type=jnp.float32)
    h = jnp.maximum(h + b1_ref[...], 0.0)

    # fused alpha|beta heads: one lane-dense matmul + Softplus (f32 elementwise)
    z = jnp.dot(h.astype(wh_ref.dtype), wh_ref[...],
                preferred_element_type=jnp.float32) + bh_ref[...]
    out_ref[...] = _softplus(z)


def deep_indep_beta_forward(x, params, *, block_b=256, use_bf16=True):
    """Returns (alpha, beta), each (batch, out_features)."""
    w1, b1, wa, ba, wb, bb = params
    B, in_f = x.shape
    hidden = w1.shape[1]
    out_f = wa.shape[1]

    # --- pad hidden to lane-dense multiple of 128 (zero cols/rows -> identical math) ---
    hid_pad = _round_up(hidden, 128)
    if hid_pad != hidden:
        w1 = jnp.pad(w1, ((0, 0), (0, hid_pad - hidden)))
        b1 = jnp.pad(b1, ((0, 0), (0, hid_pad - hidden)))
        wa = jnp.pad(wa, ((0, hid_pad - hidden), (0, 0)))
        wb = jnp.pad(wb, ((0, hid_pad - hidden), (0, 0)))

    # --- fuse the two heads and pad the head dim to a lane-dense multiple of 128 ---
    w_heads = jnp.concatenate([wa, wb], axis=1)          # (hid_pad, 2*out_f)
    b_heads = jnp.concatenate([ba, bb], axis=1)          # (1, 2*out_f)
    out_pad = _round_up(2 * out_f, 128)
    if out_pad != 2 * out_f:
        w_heads = jnp.pad(w_heads, ((0, 0), (0, out_pad - 2 * out_f)))
        b_heads = jnp.pad(b_heads, ((0, 0), (0, out_pad - 2 * out_f)))

    # --- batch tiling (multiple of 16 sublanes so bf16 x tiles stay aligned) ---
    TB = min(block_b, _round_up(B, 16))
    Bp = _round_up(B, TB)
    if Bp != B:
        x = jnp.pad(x, ((0, Bp - B), (0, 0)))

    mxu_dtype = jnp.bfloat16 if use_bf16 else x.dtype
    x_in = x.astype(mxu_dtype)
    w1_in = w1.astype(mxu_dtype)
    wh_in = w_heads.astype(mxu_dtype)
    b1_f32 = b1.astype(jnp.float32)
    bh_f32 = b_heads.astype(jnp.float32)

    itemsize = jnp.dtype(mxu_dtype).itemsize
    cost = pl.CostEstimate(
        flops=2 * Bp * (in_f * hid_pad + hid_pad * out_pad),
        transcendentals=2 * Bp * out_pad,                   # exp + log1p per element
        bytes_accessed=(Bp * in_f * itemsize
                        + in_f * hid_pad * itemsize
                        + hid_pad * 4
                        + hid_pad * out_pad * itemsize
                        + out_pad * 4
                        + Bp * out_pad * 4),
    )

    out = pl.pallas_call(
        _deep_indep_beta_kernel,
        out_shape=jax.ShapeDtypeStruct((Bp, out_pad), jnp.float32),
        grid=(Bp // TB,),
        in_specs=[
            pl.BlockSpec((TB, in_f), lambda i: (i, 0)),         # x tile (pipelined)
            pl.BlockSpec((in_f, hid_pad), lambda i: (0, 0)),    # w1 (VMEM-resident)
            pl.BlockSpec((1, hid_pad), lambda i: (0, 0)),       # b1
            pl.BlockSpec((hid_pad, out_pad), lambda i: (0, 0)),  # fused head weights
            pl.BlockSpec((1, out_pad), lambda i: (0, 0)),       # fused head bias
        ],
        out_specs=pl.BlockSpec((TB, out_pad), lambda i: (i, 0)),
        compiler_params=pltpu.CompilerParams(
            dimension_semantics=("parallel",),
            vmem_limit_bytes=64 * 1024 * 1024,
        ),
        cost_estimate=cost,
    )(x_in, w1_in, b1_f32, wh_in, bh_f32)

    alpha = out[:B, :out_f]
    beta = out[:B, out_f:2 * out_f]
    return alpha, beta


def init_params(key, in_features, hidden, out_features):
    ks = jax.random.split(key, 6)
    scale1 = 1.0 / jnp.sqrt(in_features)
    scale2 = 1.0 / jnp.sqrt(hidden)
    w1 = jax.random.uniform(ks[0], (in_features, hidden), jnp.float32, -scale1, scale1)
    b1 = jax.random.uniform(ks[1], (1, hidden), jnp.float32, -scale1, scale1)
    wa = jax.random.uniform(ks[2], (hidden, out_features), jnp.float32, -scale2, scale2)
    ba = jax.random.uniform(ks[3], (1, out_features), jnp.float32, -scale2, scale2)
    wb = jax.random.uniform(ks[4], (hidden, out_features), jnp.float32, -scale2, scale2)
    bb = jax.random.uniform(ks[5], (1, out_features), jnp.float32, -scale2, scale2)
    return w1, b1, wa, ba, wb, bb


def _reference(x, params, *, use_bf16=True):
    # Pure-JAX reference mirroring the kernel's precision choices
    # (bf16 MXU operands, f32 accumulation and elementwise math).
    w1, b1, wa, ba, wb, bb = params
    dt = jnp.bfloat16 if use_bf16 else x.dtype
    h = jnp.dot(x.astype(dt), w1.astype(dt), preferred_element_type=jnp.float32) + b1
    h = jnp.maximum(h, 0.0)
    hm = h.astype(dt)
    sp = lambda z: jnp.where(z > 20.0, z, jnp.log1p(jnp.exp(z)))
    za = jnp.dot(hm, wa.astype(dt), preferred_element_type=jnp.float32) + ba
    zb = jnp.dot(hm, wb.astype(dt), preferred_element_type=jnp.float32) + bb
    return sp(za), sp(zb)


if __name__ == "__main__":
    key = jax.random.PRNGKey(0)
    k_x, k_p = jax.random.split(key)

    batch, in_features, hidden, out_features = 8, 32, 32, 16
    x = jax.random.normal(k_x, (batch, in_features), jnp.float32)
    params = init_params(k_p, in_features, hidden, out_features)

    alpha, beta = deep_indep_beta_forward(x, params)
    jax.block_until_ready((alpha, beta))

    ref_a, ref_b = _reference(x, params)
    assert alpha.shape == (batch, out_features) and beta.shape == (batch, out_features)
    assert jnp.allclose(alpha, ref_a, atol=1e-3, rtol=1e-3)
    assert jnp.allclose(beta, ref_b, atol=1e-3, rtol=1e-3)
    # Beta-distribution parameters from Softplus are strictly positive.
    assert bool(jnp.all(alpha > 0)) and bool(jnp.all(beta > 0))

    # TODO(synk): the Beta(alpha, beta).to_event(...) distribution object in
    # `predict` is a sampling/log-prob abstraction with no Pallas equivalent;
    # only the forward pass producing (alpha, beta) is implemented here.
    print("KERNEL_OK")
</pallas_src>

<mosaic_0001>
module attributes {stable_mosaic.version = 11 : i64} {
  func.func @_deep_indep_beta_kernel(%arg0: i32, %arg1: memref<16x32xbf16, #tpu.memory_space<vmem>>, %arg2: memref<32x128xbf16, #tpu.memory_space<vmem>>, %arg3: memref<1x128xf32, #tpu.memory_space<vmem>>, %arg4: memref<128x128xbf16, #tpu.memory_space<vmem>>, %arg5: memref<1x128xf32, #tpu.memory_space<vmem>>, %arg6: memref<16x128xf32, #tpu.memory_space<vmem>>) attributes {dimension_semantics = [#tpu.dimension_semantics<parallel>], iteration_bounds = array<i64: 1>, scalar_prefetch = 0 : i64, scratch_operands = 0 : i64, tpu.core_type = #tpu.core_type<tc>, window_params = [{transform_indices = @transform_0, window_bounds = array<i64: 16, 32>}, {pipeline_mode = #tpu.pipeline_mode<synchronous>, transform_indices = @transform_1, window_bounds = array<i64: 32, 128>}, {pipeline_mode = #tpu.pipeline_mode<synchronous>, transform_indices = @transform_2, window_bounds = array<i64: 1, 128>}, {pipeline_mode = #tpu.pipeline_mode<synchronous>, transform_indices = @transform_3, window_bounds = array<i64: 128, 128>}, {pipeline_mode = #tpu.pipeline_mode<synchronous>, transform_indices = @transform_4, window_bounds = array<i64: 1, 128>}, {transform_indices = @transform_5, window_bounds = array<i64: 16, 128>}]} {
    %c0 = arith.constant 0 : index
    %c0_0 = arith.constant 0 : index
    %0 = vector.load %arg1[%c0, %c0_0] : memref<16x32xbf16, #tpu.memory_space<vmem>>, vector<16x32xbf16>
    %c0_1 = arith.constant 0 : index
    %c0_2 = arith.constant 0 : index
    %1 = vector.load %arg2[%c0_1, %c0_2] : memref<32x128xbf16, #tpu.memory_space<vmem>>, vector<32x128xbf16>
    %cst = arith.constant dense<0.000000e+00> : vector<16x128xf32>
    %2 = tpu.matmul %0, %1, %cst {dimension_numbers = #tpu.dot_dimension_numbers<[1], [0], [0], [1], [0, 0, 1, 1], [], []>} : vector<16x32xbf16>, vector<32x128xbf16>, vector<16x128xf32> -> vector<16x128xf32>
    %c0_3 = arith.constant 0 : index
    %c0_4 = arith.constant 0 : index
    %3 = vector.load %arg3[%c0_3, %c0_4] : memref<1x128xf32, #tpu.memory_space<vmem>>, vector<1x128xf32>
    %4 = vector.broadcast %3 : vector<1x128xf32> to vector<16x128xf32>
    %5 = arith.addf %2, %4 : vector<16x128xf32>
    %cst_5 = arith.constant 0.000000e+00 : f32
    %6 = vector.broadcast %cst_5 : f32 to vector<16x128xf32>
    %7 = arith.maximumf %5, %6 : vector<16x128xf32>
    %8 = arith.truncf %7 : vector<16x128xf32> to vector<16x128xbf16>
    %c0_6 = arith.constant 0 : index
    %c0_7 = arith.constant 0 : index
    %9 = vector.load %arg4[%c0_6, %c0_7] : memref<128x128xbf16, #tpu.memory_space<vmem>>, vector<128x128xbf16>
    %cst_8 = arith.constant dense<0.000000e+00> : vector<16x128xf32>
    %10 = tpu.matmul %8, %9, %cst_8 {dimension_numbers = #tpu.dot_dimension_numbers<[1], [0], [0], [1], [0, 0, 1, 1], [], []>} : vector<16x128xbf16>, vector<128x128xbf16>, vector<16x128xf32> -> vector<16x128xf32>
    %c0_9 = arith.constant 0 : index
    %c0_10 = arith.constant 0 : index
    %11 = vector.load %arg5[%c0_9, %c0_10] : memref<1x128xf32, #tpu.memory_space<vmem>>, vector<1x128xf32>
    %12 = vector.broadcast %11 : vector<1x128xf32> to vector<16x128xf32>
    %13 = arith.addf %10, %12 : vector<16x128xf32>
    %cst_11 = arith.constant 2.000000e+01 : f32
    %14 = vector.broadcast %cst_11 : f32 to vector<16x128xf32>
    %15 = arith.cmpf ogt, %13, %14 : vector<16x128xf32>
    %16 = math.exp %13 : vector<16x128xf32>
    %17 = math.log1p %16 : vector<16x128xf32>
    %18 = arith.select %15, %13, %17 : vector<16x128xi1>, vector<16x128xf32>
    %c0_12 = arith.constant 0 : index
    %c0_13 = arith.constant 0 : index
    %19 = vector.load %arg6[%c0_12, %c0_13] : memref<16x128xf32, #tpu.memory_space<vmem>>, vector<16x128xf32>
    tpu.vector_store %arg6[%c0_12, %c0_13], %18 {strides = array<i32>} : memref<16x128xf32, #tpu.memory_space<vmem>>, vector<16x128xf32>,
    return
  }
  func.func @transform_0(%arg0: i32) -> (i32, i32) {
    %c0_i32 = arith.constant 0 : i32
    %c0_i32_0 = arith.constant 0 : i32
    return %arg0, %c0_i32 : i32, i32
  }
  func.func @transform_1(%arg0: i32) -> (i32, i32) {
    %c0_i32 = arith.constant 0 : i32
    %c0_i32_0 = arith.constant 0 : i32
    %c0_i32_1 = arith.constant 0 : i32
    return %c0_i32, %c0_i32_0 : i32, i32
  }
  func.func @transform_2(%arg0: i32) -> (i32, i32) {
    %c0_i32 = arith.constant 0 : i32
    %c0_i32_0 = arith.constant 0 : i32
    %c0_i32_1 = arith.constant 0 : i32
    return %c0_i32, %c0_i32_0 : i32, i32
  }
  func.func @transform_3(%arg0: i32) -> (i32, i32) {
    %c0_i32 = arith.constant 0 : i32
    %c0_i32_0 = arith.constant 0 : i32
    %c0_i32_1 = arith.constant 0 : i32
    return %c0_i32, %c0_i32_0 : i32, i32
  }
  func.func @transform_4(%arg0: i32) -> (i32, i32) {
    %c0_i32 = arith.constant 0 : i32
    %c0_i32_0 = arith.constant 0 : i32
    %c0_i32_1 = arith.constant 0 : i32
    return %c0_i32, %c0_i32_0 : i32, i32
  }
  func.func @transform_5(%arg0: i32) -> (i32, i32) {
    %c0_i32 = arith.constant 0 : i32
    %c0_i32_0 = arith.constant 0 : i32
    return %arg0, %c0_i32 : i32, i32
  }
}

</mosaic_0001>

<llo_original>
// kernel: tpu_custom_call.1
$region0: #{tpu_custom_call.1}
  #allocation0 [shape = 'u32[]', space=smem, size = 0x4, offset = 0x4, fixed_abs, tag = 'smem constant byte address 0x4 - core index']
  #allocation1 [shape = 'u32[144,128]{1,0:T(1,128)}', space=vmem, size = 0x12000, scoped, tag = 'internal scratch']
  %s0 = inlined_call_operand.hbm [shape: bf16[16,32], index: 0, kind: input, shape index: {}]
  %s1 = inlined_call_operand.hbm [shape: bf16[32,128], index: 1, kind: input, shape index: {}]
  %s2 = inlined_call_operand.hbm [shape: f32[1,128], index: 2, kind: input, shape index: {}]
  %s3 = inlined_call_operand.hbm [shape: bf16[128,128], index: 3, kind: input, shape index: {}]
  %s4 = inlined_call_operand.hbm [shape: f32[1,128], index: 4, kind: input, shape index: {}]
  %s5 = inlined_call_operand.hbm [shape: f32[16,128], index: 5, kind: output, shape index: {}]
  %s6 = sld [smem:[#allocation0]]
  $region50: #{tpu_custom_call.1} parent=0
    _
  %s8 = ssub.s32 1, %s6
  %s9 = scalar_select 0, %s8, %s6
  $region1: #{tpu_custom_call.1} parent=0
    #allocation2 [shape = 'u8[4096]{0}', space=vmem, size = 0x1000, scoped, tag = 'input window, operand 0, single buffered']
    #allocation3 [shape = 's32[1]{0}', space=sflag, size = 0x4, scoped, tag = 'scoped memory for tpu_custom_call.1']
    #allocation4 [shape = 's32[1]{0}', space=sflag, size = 0x4, scoped, tag = 'scoped memory for tpu_custom_call.1']
    #allocation5 [shape = 'u8[8192]{0}', space=vmem, size = 0x2000, scoped, tag = 'input window, operand 1, single buffered']
    #allocation6 [shape = 's32[1]{0}', space=sflag, size = 0x4, scoped, tag = 'scoped memory for tpu_custom_call.1']
    #allocation7 [shape = 'u8[512]{0}', space=vmem, size = 0x400, scoped, tag = 'input window, operand 2, single buffered']
    #allocation8 [shape = 'u8[32768]{0}', space=vmem, size = 0x8000, scoped, tag = 'input window, operand 3, single buffered']
    #allocation9 [shape = 's32[1]{0}', space=sflag, size = 0x4, scoped, tag = 'scoped memory for tpu_custom_call.1']
    #allocation10 [shape = 'u8[512]{0}', space=vmem, size = 0x400, scoped, tag = 'input window, operand 4, single buffered']
    #allocation11 [shape = 'u8[8192]{0}', space=vmem, size = 0x2000, scoped, tag = 'output window, operand 0, single buffered']
    %10 = vsyncpa [#allocation3], 0
    %11 = vsyncpa [#allocation6], 0
    %12 = vsyncpa [#allocation9], 0
    %13 = vsyncpa [#allocation4], 0
    // Predicated region
    $region2: #{tpu_custom_call.1} parent=1 // pred_check
      _
    $region3: #{tpu_custom_call.1} parent=1 // pred_check_branch
      %15 = sbr.rel (0) target = $region5
    $region4: #{tpu_custom_call.1} parent=1 // pred_region
      %s17 = ssub.s32 128, 128
      %18 = vsyncadd [#allocation3], %s17
      %s19 = sshll.u32 [#allocation2], 4
      %s20 = int_to_ptr.vmem [resolvable:$true] %s19
      %25 = dma.hbm_to_vmem [thread:$0]  %s0, 128, %s20, [#allocation3], 64, 64, 4
    $region5: #{tpu_custom_call.1} parent=1 // pred_fallthru
      _
    // Predicated region
    $region6: #{tpu_custom_call.1} parent=1 // pred_check
      _
    $region7: #{tpu_custom_call.1} parent=1 // pred_check_branch
      %27 = sbr.rel (0) target = $region9
    $region8: #{tpu_custom_call.1} parent=1 // pred_region
      %s29 = ssub.s32 256, 256
      %30 = vsyncadd [#allocation6], %s29
      %s31 = sshll.u32 [#allocation5], 4
      %s32 = int_to_ptr.vmem [resolvable:$true] %s31
      %37 = dma.hbm_to_vmem [thread:$0]  %s1, 256, %s32, [#allocation6], 64, 64, 4
    $region9: #{tpu_custom_call.1} parent=1 // pred_fallthru
      _
    // Predicated region
    $region10: #{tpu_custom_call.1} parent=1 // pred_check
      _
    $region11: #{tpu_custom_call.1} parent=1 // pred_check_branch
      %39 = sbr.rel (0) target = $region13
    $region12: #{tpu_custom_call.1} parent=1 // pred_region
      %s41 = ssub.s32 16, 16
      %42 = vsyncadd [#allocation6], %s41
      %s44 = sshll.u32 [#allocation7], 4
      %s45 = int_to_ptr.vmem [resolvable:$true] %s44
      %47 = dma.hbm_to_vmem [thread:$0]  %s2, 16, %s45, [#allocation6]
    $region13: #{tpu_custom_call.1} parent=1 // pred_fallthru
      _
    // Predicated region
    $region14: #{tpu_custom_call.1} parent=1 // pred_check
      _
    $region15: #{tpu_custom_call.1} parent=1 // pred_check_branch
      %49 = sbr.rel (0) target = $region17
    $region16: #{tpu_custom_call.1} parent=1 // pred_region
      %s51 = ssub.s32 1024, 1024
      %52 = vsyncadd [#allocation9], %s51
      %s53 = sshll.u32 [#allocation8], 4
      %s54 = int_to_ptr.vmem [resolvable:$true] %s53
      %59 = dma.hbm_to_vmem [thread:$0]  %s3, 1024, %s54, [#allocation9], 64, 64, 4
    $region17: #{tpu_custom_call.1} parent=1 // pred_fallthru
      _
    // Predicated region
    $region18: #{tpu_custom_call.1} parent=1 // pred_check
      _
    $region19: #{tpu_custom_call.1} parent=1 // pred_check_branch
      %61 = sbr.rel (0) target = $region21
    $region20: #{tpu_custom_call.1} parent=1 // pred_region
      %s63 = ssub.s32 16, 16
      %64 = vsyncadd [#allocation9], %s63
      %s66 = sshll.u32 [#allocation10], 4
      %s67 = int_to_ptr.vmem [resolvable:$true] %s66
      %69 = dma.hbm_to_vmem [thread:$0]  %s4, 16, %s67, [#allocation9]
    $region21: #{tpu_custom_call.1} parent=1 // pred_fallthru
      _
    // Predicated region
    $region22: #{tpu_custom_call.1} parent=1 // pred_check
      _
    $region23: #{tpu_custom_call.1} parent=1 // pred_check_branch
      %71 = sbr.rel (0) target = $region25
    $region24: #{tpu_custom_call.1} parent=1 // pred_region
      %72 = dma.done [#allocation3], 128
    $region25: #{tpu_custom_call.1} parent=1 // pred_fallthru
      _
    // Predicated region
    $region26: #{tpu_custom_call.1} parent=1 // pred_check
      _
    $region27: #{tpu_custom_call.1} parent=1 // pred_check_branch
      %74 = sbr.rel (0) target = $region29
    $region28: #{tpu_custom_call.1} parent=1 // pred_region
      %75 = dma.done [#allocation6], 256
    $region29: #{tpu_custom_call.1} parent=1 // pred_fallthru
      _
    // Predicated region
    $region30: #{tpu_custom_call.1} parent=1 // pred_check
      _
    $region31: #{tpu_custom_call.1} parent=1 // pred_check_branch
      %77 = sbr.rel (0) target = $region33
    $region32: #{tpu_custom_call.1} parent=1 // pred_region
      %78 = dma.done [#allocation6], 16
    $region33: #{tpu_custom_call.1} parent=1 // pred_fallthru
      _
    // Predicated region
    $region34: #{tpu_custom_call.1} parent=1 // pred_check
      _
    $region35: #{tpu_custom_call.1} parent=1 // pred_check_branch
      %80 = sbr.rel (0) target = $region37
    $region36: #{tpu_custom_call.1} parent=1 // pred_region
      %81 = dma.done [#allocation9], 1024
    $region37: #{tpu_custom_call.1} parent=1 // pred_fallthru
      _
    // Predicated region
    $region38: #{tpu_custom_call.1} parent=1 // pred_check
      _
    $region39: #{tpu_custom_call.1} parent=1 // pred_check_branch
      %83 = sbr.rel (0) target = $region41
    $region40: #{tpu_custom_call.1} parent=1 // pred_region
      %84 = dma.done [#allocation9], 16
    $region41: #{tpu_custom_call.1} parent=1 // pred_fallthru
      _
    %v86 = vld [vmem:[#allocation2] sm:$0xf]
    %v87 = vld [vmem:[#allocation2 + $0x4] sm:$0xf]
    %v88 = vld [vmem:[#allocation5] sm:$0xf]
    %v89 = vld [vmem:[#allocation5 + $0x4] sm:$0xf]
    %v90 = vld [vmem:[#allocation5 + $0x8] sm:$0xf]
    %v91 = vld [vmem:[#allocation5 + $0xc] sm:$0xf]
    %v92 = vld [vmem:[#allocation7] sm:$0x1]
    %v94 = vlaneseq
    %v95 = vshrl.u32 %v94, 7
    %v96 = vsub.s32 0, %v95
    %v97 = vrot.slane %v92, %v96
    %v101 = vunpack.c.l.b16 %v86
    %v102 = vunpack.c.l.b16 %v87
    %v103 = vpack.c.b16 %v102, %v101
    %v108 = vunpack.c.l.b16 %v88
    %v109 = vunpack.c.l.b16 %v89
    %v110 = vunpack.c.l.b16 %v90
    %v111 = vunpack.c.l.b16 %v91
    %v112 = vpack.c.b16 %v109, %v108
    %v113 = vpack.c.b16 %v111, %v110
    %vm116 = vcmask 261120
    %v118 = vsel %vm116, %v103, 0
    %120 = vmatprep.subr.bf16.mxu0 0
    %121 = vmatpush1.bf16.msra.mxu0 %v112
    %122 = vmatprep.subr.bf16.mxu0 0
    %123 = vmatpush1.bf16.msra.mxu0 %v113
    %124 = vmatprep.subr.bf16.mxu0 0
    %125 = vmatpush1.bf16.msra.mxu0 0
    %126 = vmatprep.subr.bf16.mxu0 0
    %127 = vmatpush1.bf16.msra.mxu0 0
    %128 = vmatprep.subr.bf16.mxu0 0
    %129 = vmatpush1.bf16.msra.mxu0 0
    %130 = vmatprep.subr.bf16.mxu0 0
    %131 = vmatpush1.bf16.msra.mxu0 0
    %132 = vmatprep.subr.bf16.mxu0 0
    %133 = vmatpush1.bf16.msra.mxu0 0
    %134 = vmatprep.subr.bf16.mxu0 0
    %135 = vmatpush1.bf16.msra.mxu0 0
    %136 = vmatprep.subr.bf16.mxu0 0
    %137 = vmatpush1.bf16.msra.mxu0 0
    %138 = vmatprep.subr.bf16.mxu0 0
    %139 = vmatpush1.bf16.msra.mxu0 0
    %140 = vmatprep.subr.bf16.mxu0 0
    %141 = vmatpush1.bf16.msra.mxu0 0
    %142 = vmatprep.subr.bf16.mxu0 0
    %143 = vmatpush1.bf16.msra.mxu0 0
    %144 = vmatprep.subr.bf16.mxu0 0
    %145 = vmatpush1.bf16.msra.mxu0 0
    %146 = vmatprep.subr.bf16.mxu0 0
    %147 = vmatpush1.bf16.msra.mxu0 0
    %148 = vmatprep.subr.bf16.mxu0 0
    %149 = vmatpush1.bf16.msra.mxu0 0
    %150 = vmatprep.subr.bf16.mxu0 0
    %151 = vmatpush1.bf16.msra.mxu0 0
    %152 = vmatprep.mubr.bf16.mxu0 0
    %153 = vmatmul.mubr.bf16.gmra.mrb[0].mxu0 %v118
    %v154 = vpop.f32.mrb[0].mxu0
    %v155 = vadd.f32 %v97, %v154
    %v156 = vpop.f32.mrb[0].mxu0
    %v157 = vpop.f32.mrb[0].mxu0
    %v158 = vadd.f32 %v97, %v157
    %v159 = vpop.f32.mrb[0].mxu0
    %160 = vdwg.mxu0
    %v161 = vmax.f32 %v155, 0.0
    %v162 = vmax.f32 %v158, 0.0
    %v163 = vpack.c.bf16 %v162, %v161
    %v164 = vld [vmem:[#allocation8] sm:$0xf]
    %v165 = vld [vmem:[#allocation8 + $0x4] sm:$0xf]
    %v166 = vld [vmem:[#allocation8 + $0x8] sm:$0xf]
    %v167 = vld [vmem:[#allocation8 + $0xc] sm:$0xf]
    %v168 = vld [vmem:[#allocation8 + $0x10] sm:$0xf]
    %v169 = vld [vmem:[#allocation8 + $0x14] sm:$0xf]
    %v170 = vld [vmem:[#allocation8 + $0x18] sm:$0xf]
    %v171 = vld [vmem:[#allocation8 + $0x1c] sm:$0xf]
    %v172 = vld [vmem:[#allocation8 + $0x20] sm:$0xf]
    %v173 = vld [vmem:[#allocation8 + $0x24] sm:$0xf]
    %v174 = vld [vmem:[#allocation8 + $0x28] sm:$0xf]
    %v175 = vld [vmem:[#allocation8 + $0x2c] sm:$0xf]
    %v176 = vld [vmem:[#allocation8 + $0x30] sm:$0xf]
    %v177 = vld [vmem:[#allocation8 + $0x34] sm:$0xf]
    %v178 = vld [vmem:[#allocation8 + $0x38] sm:$0xf]
    %v179 = vld [vmem:[#allocation8 + $0x3c] sm:$0xf]
    %v180 = vld [vmem:[#allocation10] sm:$0x1]
    %v182 = vlaneseq
    %v183 = vshrl.u32 %v182, 7
    %v184 = vsub.s32 0, %v183
    %v185 = vrot.slane %v180, %v184
    %v203 = vunpack.c.l.b16 %v164
    %v204 = vunpack.c.l.b16 %v165
    %v205 = vunpack.c.l.b16 %v166
    %v206 = vunpack.c.l.b16 %v167
    %v207 = vunpack.c.l.b16 %v168
    %v208 = vunpack.c.l.b16 %v169
    %v209 = vunpack.c.l.b16 %v170
    %v210 = vunpack.c.l.b16 %v171
    %v211 = vunpack.c.l.b16 %v172
    %v212 = vunpack.c.l.b16 %v173
    %v213 = vunpack.c.l.b16 %v174
    %v214 = vunpack.c.l.b16 %v175
    %v215 = vunpack.c.l.b16 %v176
    %v216 = vunpack.c.l.b16 %v177
    %v217 = vunpack.c.l.b16 %v178
    %v218 = vunpack.c.l.b16 %v179
    %v219 = vpack.c.b16 %v204, %v203
    %v220 = vpack.c.b16 %v206, %v205
    %v221 = vpack.c.b16 %v208, %v207
    %v222 = vpack.c.b16 %v210, %v209
    %v223 = vpack.c.b16 %v212, %v211
    %v224 = vpack.c.b16 %v214, %v213
    %v225 = vpack.c.b16 %v216, %v215
    %v226 = vpack.c.b16 %v218, %v217
    %235 = vmatprep.subr.bf16.mxu0 0
    %236 = vmatpush1.bf16.msra.mxu0 %v219
    %237 = vmatprep.subr.bf16.mxu0 0
    %238 = vmatpush1.bf16.msra.mxu0 %v220
    %239 = vmatprep.subr.bf16.mxu0 0
    %240 = vmatpush1.bf16.msra.mxu0 %v221
    %241 = vmatprep.subr.bf16.mxu0 0
    %242 = vmatpush1.bf16.msra.mxu0 %v222
    %243 = vmatprep.subr.bf16.mxu0 0
    %244 = vmatpush1.bf16.msra.mxu0 %v223
    %245 = vmatprep.subr.bf16.mxu0 0
    %246 = vmatpush1.bf16.msra.mxu0 %v224
    %247 = vmatprep.subr.bf16.mxu0 0
    %248 = vmatpush1.bf16.msra.mxu0 %v225
    %249 = vmatprep.subr.bf16.mxu0 0
    %250 = vmatpush1.bf16.msra.mxu0 %v226
    %251 = vmatprep.subr.bf16.mxu0 0
    %252 = vmatpush1.bf16.msra.mxu0 0
    %253 = vmatprep.subr.bf16.mxu0 0
    %254 = vmatpush1.bf16.msra.mxu0 0
    %255 = vmatprep.subr.bf16.mxu0 0
    %256 = vmatpush1.bf16.msra.mxu0 0
    %257 = vmatprep.subr.bf16.mxu0 0
    %258 = vmatpush1.bf16.msra.mxu0 0
    %259 = vmatprep.subr.bf16.mxu0 0
    %260 = vmatpush1.bf16.msra.mxu0 0
    %261 = vmatprep.subr.bf16.mxu0 0
    %262 = vmatpush1.bf16.msra.mxu0 0
    %263 = vmatprep.subr.bf16.mxu0 0
    %264 = vmatpush1.bf16.msra.mxu0 0
    %265 = vmatprep.subr.bf16.mxu0 0
    %266 = vmatpush1.bf16.msra.mxu0 0
    %267 = vmatprep.mubr.bf16.mxu0 0
    %268 = vmatmul.mubr.bf16.gmra.mrb[0].mxu0 %v163
    %v269 = vpop.f32.mrb[0].mxu0
    %v270 = vadd.f32 %v185, %v269
    %v271 = vpop.f32.mrb[0].mxu0
    %v272 = vpop.f32.mrb[0].mxu0
    %v273 = vadd.f32 %v185, %v272
    %v274 = vpop.f32.mrb[0].mxu0
    %275 = vdwg.mxu0
    %vm276 = vcmp.gt.f32.partialorder %v270, 20.0
    %vm277 = vcmp.gt.f32.partialorder %v273, 20.0
    %v278 = vmul.f32 %v270, 1.442695
    %v279 = vpow.pop %v278
    %v280 = vmul.f32 %v273, 1.442695
    %v281 = vpow.pop %v280
    %v282 = vadd.f32 %v279, 1.0
    %v283 = vlog2.pop %v282
    %v284 = vmul.f32 %v283, 0.6931472
    %v285 = vmul.f32 -0.5, %v279
    %v286 = vadd.f32 %v285, 1.0
    %v287 = vmul.f32 %v286, %v279
    %v288 = vand.u32 2147483647, %v279
    %vm289 = vcmp.lt.f32.partialorder %v288, 0.0004427343
    %v290 = vsel %vm289, %v287, %v284
    %v291 = vadd.f32 %v281, 1.0
    %v292 = vlog2.pop %v291
    %v293 = vmul.f32 %v292, 0.6931472
    %v294 = vmul.f32 -0.5, %v281
    %v295 = vadd.f32 %v294, 1.0
    %v296 = vmul.f32 %v295, %v281
    %v297 = vand.u32 2147483647, %v281
    %vm298 = vcmp.lt.f32.partialorder %v297, 0.0004427343
    %v299 = vsel %vm298, %v296, %v293
    %v300 = vsel %vm276, %v270, %v290
    %v301 = vsel %vm277, %v273, %v299
    %302 = vst [vmem:[#allocation11] sm:$0xff] %v300
    %303 = vst [vmem:[#allocation11 + $0x8] sm:$0xff] %v301
    // Predicated region
    $region42: #{tpu_custom_call.1} parent=1 // pred_check
      _
    $region43: #{tpu_custom_call.1} parent=1 // pred_check_branch
      %305 = sbr.rel (0) target = $region45
    $region44: #{tpu_custom_call.1} parent=1 // pred_region
      %s307 = ssub.s32 256, 256
      %308 = vsyncadd [#allocation4], %s307
      %s309 = sshll.u32 [#allocation11], 4
      %s310 = int_to_ptr.vmem [resolvable:$true] %s309
      %315 = dma.vmem_to_hbm [thread:$0]  %s310, 256, %s5, [#allocation4], 128, 128, 8
    $region45: #{tpu_custom_call.1} parent=1 // pred_fallthru
      _
    // Predicated region
    $region46: #{tpu_custom_call.1} parent=1 // pred_check
      _
    $region47: #{tpu_custom_call.1} parent=1 // pred_check_branch
      %317 = sbr.rel (0) target = $region49
    $region48: #{tpu_custom_call.1} parent=1 // pred_region
      %318 = dma.done [#allocation4], 256
    $region49: #{tpu_custom_call.1} parent=1 // pred_fallthru
      _
    %319 = vsyncpa [#allocation3], 1
    %320 = vsyncpa [#allocation6], 1
    %321 = vsyncpa [#allocation9], 1
    %322 = vsyncpa [#allocation4], 1

</llo_original>
